<compile_context>
chip_gen: v7x
topology: tpu7x:2x2x1
jax: 0.10.0
libtpu: 0.0.40
codegen_flags: <defaults>
</compile_context>

<pallas_src>
import functools
import math

import jax
import jax.numpy as jnp
from jax.experimental import pallas as pl
from jax.experimental.pallas import tpu as pltpu


def _arcface_kernel(x_ref, wt_ref, xinv_ref, label_ref, out_ref, winv_ref, *,
                    cos_m, sin_m, th, mm, s, easy_margin, tile_c):
    # x_ref:     (TILE_B, E)       compute dtype (bf16 default)
    # wt_ref:    (E, TILE_C)       compute dtype (W transposed, MXU-native)
    # xinv_ref:  (TILE_B, 1)       f32 per-row inverse norms (precomputed)
    # label_ref: (TILE_B, 1)       int32
    # out_ref:   (TILE_B, TILE_C)  out dtype (f32 default)
    # winv_ref:  (1, TILE_C)       f32 VMEM scratch, persists across grid steps

    # New W tile only arrives when the inner (B) index resets to 0: compute its
    # per-class inverse norms once and reuse them for the whole inner loop.
    @pl.when(pl.program_id(1) == 0)
    def _():
        wf = wt_ref[...].astype(jnp.float32)
        # rsqrt(max(||w||^2, eps^2)) == 1 / max(||w||, eps)  (F.normalize, 1e-12)
        winv_ref[...] = jax.lax.rsqrt(
            jnp.maximum(jnp.sum(wf * wf, axis=0, keepdims=True), 1e-24))

    # Raw inner products on the MXU, f32 accumulation (operands untouched).
    raw = jax.lax.dot_general(
        x_ref[...], wt_ref[...],
        dimension_numbers=(((1,), (0,)), ((), ())),
        preferred_element_type=jnp.float32)

    cosine = raw * xinv_ref[...] * winv_ref[...]            # (TILE_B, TILE_C) f32

    tb, tc = cosine.shape
    # Tile-local one-hot: shift the label once instead of offsetting the iota.
    label_local = label_ref[...] - pl.program_id(0) * tile_c      # (TILE_B, 1)
    col = jax.lax.broadcasted_iota(jnp.int32, (tb, tc), 1)
    is_target = col == label_local                                 # (TILE_B, TILE_C)

    # phi is only consumed at the one-hot column: gather the target cosine per
    # row (masked lane reduce, XLU) and do the margin math on a (TILE_B, 1)
    # vector instead of the whole tile.  Clamp keeps sqrt real under rounding.
    cos_t = jnp.sum(jnp.where(is_target, cosine, 0.0), axis=-1, keepdims=True)
    sin_t = jnp.sqrt(jnp.maximum(1.0 - cos_t * cos_t, 0.0))
    phi_t = cos_t * cos_m - sin_t * sin_m
    if easy_margin:
        phi_t = jnp.where(cos_t > 0.0, phi_t, cos_t)
    else:
        phi_t = jnp.where(cos_t > th, phi_t, cos_t - mm)

    out_ref[...] = (jnp.where(is_target, phi_t, cosine) * s).astype(out_ref.dtype)


def arcface_forward(x, weight, label, *, s=64.0, m=0.5, easy_margin=False,
                    compute_dtype=jnp.bfloat16, out_dtype=jnp.float32,
                    tile_b=512, tile_c=1024):
    """ArcFace.forward.  x: (B, E), weight: (C, E), label: (B,) int -> (B, C)."""
    B, E = x.shape
    C, E2 = weight.shape
    assert E == E2, "embedding size mismatch"

    # ---- tile selection -----------------------------------------------------
    # 256-aligned defaults pack the v6e/v7x 256x256 MXU; v5e only needs 128.
    tile_b = max(8, (int(tile_b) // 8) * 8)
    tile_c = max(128, (int(tile_c) // 128) * 128)

    in_bytes = jnp.dtype(compute_dtype).itemsize
    out_bytes = jnp.dtype(out_dtype).itemsize

    def vmem_est(tb, tc):
        # double-buffered inputs/outputs + the per-class inverse-norm scratch
        return (2 * (tb * E * in_bytes + tc * E * in_bytes
                     + tb * tc * out_bytes + tb * 8)
                + tc * 4)

    budget = 24 * 1024 * 1024            # comfortable on v5e/v6e/v7x
    while vmem_est(tile_b, tile_c) > budget:
        if tile_c > 128 and tile_c >= tile_b:
            tile_c //= 2
        elif tile_b > 8:
            tile_b //= 2
        elif tile_c > 128:
            tile_c //= 2
        else:
            break
    # A single block spanning the full (possibly unaligned) axis is always legal.
    if tile_b >= B:
        tile_b = B
    if tile_c >= C:
        tile_c = C

    # C outer (streamed exactly once, megacore-split axis on v7x); B inner.
    grid = (pl.cdiv(C, tile_c), pl.cdiv(B, tile_b))

    # ---- cheap wrapper-side prep (no passes over W except one cast+transpose)
    # f32 row inverse norms from the ORIGINAL x (F.normalize, eps=1e-12).
    x32 = x.astype(jnp.float32)
    x_inv = jax.lax.rsqrt(
        jnp.maximum(jnp.sum(x32 * x32, axis=-1, keepdims=True), 1e-24))

    # MXU operands in compute_dtype; W transposed once to (E, C) so the RHS
    # tile arrives MXU-native (K, N) and lane-dense in the class axis.
    xc = x.astype(compute_dtype)
    wt = weight.T.astype(compute_dtype)
    lab = label.astype(jnp.int32).reshape(B, 1)

    kernel = functools.partial(
        _arcface_kernel,
        cos_m=math.cos(m), sin_m=math.sin(m),
        th=math.cos(math.pi - m), mm=math.sin(math.pi - m) * m,
        s=float(s), easy_margin=bool(easy_margin), tile_c=tile_c)

    # Stay under v7x's 64 MiB physical VMEM while raising the scoped default.
    vmem_limit = int(min(48 * 1024 * 1024,
                         max(32 * 1024 * 1024, 2 * vmem_est(tile_b, tile_c))))

    out = pl.pallas_call(
        kernel,
        out_shape=jax.ShapeDtypeStruct((B, C), out_dtype),
        grid=grid,
        in_specs=[
            pl.BlockSpec((tile_b, E), lambda j, i: (i, 0)),       # x tile
            pl.BlockSpec((E, tile_c), lambda j, i: (0, j)),       # W^T tile
            pl.BlockSpec((tile_b, 1), lambda j, i: (i, 0)),       # 1/||x_b||
            pl.BlockSpec((tile_b, 1), lambda j, i: (i, 0)),       # labels
        ],
        out_specs=pl.BlockSpec((tile_b, tile_c), lambda j, i: (i, j)),
        scratch_shapes=[pltpu.VMEM((1, tile_c), jnp.float32)],    # 1/||w_c||
        compiler_params=pltpu.CompilerParams(
            dimension_semantics=("parallel", "arbitrary"),
            vmem_limit_bytes=vmem_limit),
    )(xc, wt, x_inv, lab)
    return out


def _reference(x, weight, label, *, s=64.0, m=0.5, easy_margin=False):
    # Pure-JAX mirror of the PyTorch forward (same sqrt clamp as the kernel).
    xn = x / jnp.maximum(jnp.linalg.norm(x, axis=-1, keepdims=True), 1e-12)
    wn = weight / jnp.maximum(jnp.linalg.norm(weight, axis=-1, keepdims=True), 1e-12)
    cosine = xn @ wn.T
    sine = jnp.sqrt(jnp.maximum(1.0 - cosine * cosine, 0.0))
    phi = cosine * math.cos(m) - sine * math.sin(m)
    if easy_margin:
        phi = jnp.where(cosine > 0.0, phi, cosine)
    else:
        phi = jnp.where(cosine > math.cos(math.pi - m), phi,
                        cosine - math.sin(math.pi - m) * m)
    one_hot = jax.nn.one_hot(label, cosine.shape[-1], dtype=cosine.dtype)
    return (one_hot * phi + (1.0 - one_hot) * cosine) * s


if __name__ == "__main__":
    # Small, deliberately non-aligned shapes: B=13 (2 partial B-tiles of 8),
    # C=333 (3 partial C-tiles of 128) exercise the edge-tile path, the
    # pl.when scratch reuse across the inner axis, and the single-block path.
    B, E, C = 13, 32, 333
    s, m = 64.0, 0.5

    key = jax.random.PRNGKey(0)
    kx, kw, kl = jax.random.split(key, 3)

    x = jax.random.normal(kx, (B, E), dtype=jnp.float32)
    bound = math.sqrt(6.0 / (C + E))      # xavier_uniform_ on (out, in) weight
    weight = jax.random.uniform(kw, (C, E), dtype=jnp.float32,
                                minval=-bound, maxval=bound)
    label = jax.random.randint(kl, (B,), 0, C, dtype=jnp.int32)

    ref = _reference(x, weight, label, s=s, m=m, easy_margin=False)

    # 1) Strict check: f32 operands, small tiles -> multi-block grid.
    out = jax.block_until_ready(
        arcface_forward(x, weight, label, s=s, m=m, easy_margin=False,
                        compute_dtype=jnp.float32, tile_b=8, tile_c=128))
    assert out.shape == (B, C)
    assert jnp.allclose(out, ref, atol=5e-4, rtol=1e-5), \
        f"f32 max abs err {jnp.max(jnp.abs(out - ref))}"

    # 2) easy_margin branch with default (single-block) tiles.
    out2 = jax.block_until_ready(
        arcface_forward(x, weight, label, s=s, m=m, easy_margin=True,
                        compute_dtype=jnp.float32))
    ref2 = _reference(x, weight, label, s=s, m=m, easy_margin=True)
    assert jnp.allclose(out2, ref2, atol=5e-4, rtol=1e-5), \
        f"easy_margin max abs err {jnp.max(jnp.abs(out2 - ref2))}"

    # 3) Default production path: bf16 MXU operands, f32 accumulation/epilogue.
    out3 = jax.block_until_ready(
        arcface_forward(x, weight, label, s=s, m=m, easy_margin=False,
                        tile_b=8, tile_c=128))
    err3 = jnp.max(jnp.abs(out3 - ref))
    assert err3 < 2.0, f"bf16 max abs err {err3}"   # s=64-scaled logits, bf16 inputs

    print("KERNEL_OK")
</pallas_src>

<mosaic_0001>
module attributes {stable_mosaic.version = 11 : i64} {
  func.func @_arcface_kernel(%arg0: i32, %arg1: i32, %arg2: memref<8x32xf32, #tpu.memory_space<vmem>>, %arg3: memref<32x128xf32, #tpu.memory_space<vmem>>, %arg4: memref<8x1xf32, #tpu.memory_space<vmem>>, %arg5: memref<8x1xi32, #tpu.memory_space<vmem>>, %arg6: memref<8x128xf32, #tpu.memory_space<vmem>>, %arg7: memref<1x128xf32, #tpu.memory_space<vmem>>) attributes {dimension_semantics = [#tpu.dimension_semantics<parallel>, #tpu.dimension_semantics<arbitrary>], iteration_bounds = array<i64: 3, 2>, scalar_prefetch = 0 : i64, scratch_operands = 1 : i64, tpu.core_type = #tpu.core_type<tc>, window_params = [{transform_indices = @transform_0, window_bounds = array<i64: 8, 32>}, {transform_indices = @transform_1, window_bounds = array<i64: 32, 128>}, {transform_indices = @transform_2, window_bounds = array<i64: 8, 1>}, {transform_indices = @transform_3, window_bounds = array<i64: 8, 1>}, {transform_indices = @transform_4, window_bounds = array<i64: 8, 128>}]} {
    %c0_i32 = arith.constant 0 : i32
    %0 = arith.cmpi eq, %arg1, %c0_i32 : i32
    %1 = arith.extui %0 : i1 to i32
    %c0_i32_0 = arith.constant 0 : i32
    %2 = arith.cmpi ne, %1, %c0_i32_0 : i32
    scf.if %2 {
      %c0_21 = arith.constant 0 : index
      %c0_22 = arith.constant 0 : index
      %45 = vector.load %arg3[%c0_21, %c0_22] : memref<32x128xf32, #tpu.memory_space<vmem>>, vector<32x128xf32>
      %46 = arith.mulf %45, %45 : vector<32x128xf32>
      %cst_23 = arith.constant dense<0.000000e+00> : vector<128xf32>
      %47 = vector.multi_reduction <add>, %46, %cst_23 [0] : vector<32x128xf32> to vector<128xf32>
      %48 = vector.shape_cast %47 : vector<128xf32> to vector<1x128xf32>
      %cst_24 = arith.constant 1.000000e-24 : f32
      %49 = vector.broadcast %cst_24 : f32 to vector<1x128xf32>
      %50 = arith.maximumf %48, %49 : vector<1x128xf32>
      %51 = math.rsqrt %50 : vector<1x128xf32>
      %c0_25 = arith.constant 0 : index
      %c0_26 = arith.constant 0 : index
      %52 = vector.load %arg7[%c0_25, %c0_26] : memref<1x128xf32, #tpu.memory_space<vmem>>, vector<1x128xf32>
      tpu.vector_store %arg7[%c0_25, %c0_26], %51 {strides = array<i32>} : memref<1x128xf32, #tpu.memory_space<vmem>>, vector<1x128xf32>,
    } else {
    }
    %c0 = arith.constant 0 : index
    %c0_1 = arith.constant 0 : index
    %3 = vector.load %arg2[%c0, %c0_1] : memref<8x32xf32, #tpu.memory_space<vmem>>, vector<8x32xf32>
    %c0_2 = arith.constant 0 : index
    %c0_3 = arith.constant 0 : index
    %4 = vector.load %arg3[%c0_2, %c0_3] : memref<32x128xf32, #tpu.memory_space<vmem>>, vector<32x128xf32>
    %cst = arith.constant dense<0.000000e+00> : vector<8x128xf32>
    %5 = tpu.matmul %3, %4, %cst {dimension_numbers = #tpu.dot_dimension_numbers<[1], [0], [0], [1], [0, 0, 1, 1], [], []>} : vector<8x32xf32>, vector<32x128xf32>, vector<8x128xf32> -> vector<8x128xf32>
    %c0_4 = arith.constant 0 : index
    %c0_5 = arith.constant 0 : index
    %6 = vector.load %arg4[%c0_4, %c0_5] : memref<8x1xf32, #tpu.memory_space<vmem>>, vector<8x1xf32>
    %7 = vector.broadcast %6 : vector<8x1xf32> to vector<8x128xf32>
    %8 = arith.mulf %5, %7 : vector<8x128xf32>
    %c0_6 = arith.constant 0 : index
    %c0_7 = arith.constant 0 : index
    %9 = vector.load %arg7[%c0_6, %c0_7] : memref<1x128xf32, #tpu.memory_space<vmem>>, vector<1x128xf32>
    %10 = vector.broadcast %9 : vector<1x128xf32> to vector<8x128xf32>
    %11 = arith.mulf %8, %10 : vector<8x128xf32>
    %c0_8 = arith.constant 0 : index
    %c0_9 = arith.constant 0 : index
    %12 = vector.load %arg5[%c0_8, %c0_9] : memref<8x1xi32, #tpu.memory_space<vmem>>, vector<8x1xi32>
    %c128_i32 = arith.constant 128 : i32
    %13 = arith.muli %arg0, %c128_i32 : i32
    %14 = vector.broadcast %13 : i32 to vector<8x1xi32>
    %15 = arith.subi %12, %14 : vector<8x1xi32>
    %16 = tpu.iota {dimensions = array<i32: 1>} : vector<8x128xi32>
    %17 = vector.broadcast %15 : vector<8x1xi32> to vector<8x128xi32>
    %18 = arith.cmpi eq, %16, %17 : vector<8x128xi32>
    %cst_10 = arith.constant 0.000000e+00 : f32
    %19 = vector.broadcast %cst_10 : f32 to vector<8x128xf32>
    %20 = arith.select %18, %11, %19 : vector<8x128xi1>, vector<8x128xf32>
    %cst_11 = arith.constant dense<0.000000e+00> : vector<8xf32>
    %21 = vector.multi_reduction <add>, %20, %cst_11 [1] : vector<8x128xf32> to vector<8xf32>
    %22 = vector.shape_cast %21 : vector<8xf32> to vector<8x1xf32>
    %23 = arith.mulf %22, %22 : vector<8x1xf32>
    %cst_12 = arith.constant 1.000000e+00 : f32
    %24 = vector.broadcast %cst_12 : f32 to vector<8x1xf32>
    %25 = arith.subf %24, %23 : vector<8x1xf32>
    %cst_13 = arith.constant 0.000000e+00 : f32
    %26 = vector.broadcast %cst_13 : f32 to vector<8x1xf32>
    %27 = arith.maximumf %25, %26 : vector<8x1xf32>
    %28 = math.sqrt %27 : vector<8x1xf32>
    %cst_14 = arith.constant 0.87758255 : f32
    %29 = vector.broadcast %cst_14 : f32 to vector<8x1xf32>
    %30 = arith.mulf %22, %29 : vector<8x1xf32>
    %cst_15 = arith.constant 0.47942555 : f32
    %31 = vector.broadcast %cst_15 : f32 to vector<8x1xf32>
    %32 = arith.mulf %28, %31 : vector<8x1xf32>
    %33 = arith.subf %30, %32 : vector<8x1xf32>
    %cst_16 = arith.constant -0.87758255 : f32
    %34 = vector.broadcast %cst_16 : f32 to vector<8x1xf32>
    %35 = arith.cmpf ogt, %22, %34 : vector<8x1xf32>
    %cst_17 = arith.constant 0.239712775 : f32
    %36 = vector.broadcast %cst_17 : f32 to vector<8x1xf32>
    %37 = arith.subf %22, %36 : vector<8x1xf32>
    %38 = arith.select %35, %33, %37 : vector<8x1xi1>, vector<8x1xf32>
    %39 = vector.shape_cast %38 : vector<8x1xf32> to vector<8x1xf32>
    %40 = vector.broadcast %39 : vector<8x1xf32> to vector<8x128xf32>
    %41 = arith.select %18, %40, %11 : vector<8x128xi1>, vector<8x128xf32>
    %cst_18 = arith.constant 6.400000e+01 : f32
    %42 = vector.broadcast %cst_18 : f32 to vector<8x128xf32>
    %43 = arith.mulf %41, %42 : vector<8x128xf32>
    %c0_19 = arith.constant 0 : index
    %c0_20 = arith.constant 0 : index
    %44 = vector.load %arg6[%c0_19, %c0_20] : memref<8x128xf32, #tpu.memory_space<vmem>>, vector<8x128xf32>
    tpu.vector_store %arg6[%c0_19, %c0_20], %43 {strides = array<i32>} : memref<8x128xf32, #tpu.memory_space<vmem>>, vector<8x128xf32>,
    return
  }
  func.func @transform_0(%arg0: i32, %arg1: i32) -> (i32, i32) {
    %c0_i32 = arith.constant 0 : i32
    %c0_i32_0 = arith.constant 0 : i32
    return %arg1, %c0_i32 : i32, i32
  }
  func.func @transform_1(%arg0: i32, %arg1: i32) -> (i32, i32) {
    %c0_i32 = arith.constant 0 : i32
    %c0_i32_0 = arith.constant 0 : i32
    return %c0_i32, %arg0 : i32, i32
  }
  func.func @transform_2(%arg0: i32, %arg1: i32) -> (i32, i32) {
    %c0_i32 = arith.constant 0 : i32
    %c0_i32_0 = arith.constant 0 : i32
    return %arg1, %c0_i32 : i32, i32
  }
  func.func @transform_3(%arg0: i32, %arg1: i32) -> (i32, i32) {
    %c0_i32 = arith.constant 0 : i32
    %c0_i32_0 = arith.constant 0 : i32
    return %arg1, %c0_i32 : i32, i32
  }
  func.func @transform_4(%arg0: i32, %arg1: i32) -> (i32, i32) {
    %c0_i32 = arith.constant 0 : i32
    return %arg1, %arg0 : i32, i32
  }
}

</mosaic_0001>

<llo_original>
// kernel: tpu_custom_call.1
$region0: #{tpu_custom_call.1}
  #allocation0 [shape = 'u32[]', space=smem, size = 0x4, offset = 0x4, fixed_abs, tag = 'smem constant byte address 0x4 - core index']
  #allocation1 [shape = 'u32[144,128]{1,0:T(1,128)}', space=vmem, size = 0x12000, scoped, tag = 'internal scratch']
  #allocation2 [shape = 'f32[1,128]{1,0:T(1,128)}', space=vmem, size = 0x200, scoped, tag = 'scratch operand']
  %s0 = inlined_call_operand.vmem [shape: f32[13,32], index: 0, kind: input, shape index: {}]
  %s1 = inlined_call_operand.hbm [shape: f32[32,333], index: 1, kind: input, shape index: {}]
  %s2 = inlined_call_operand.vmem [shape: f32[13,1], index: 2, kind: input, shape index: {}]
  %s3 = inlined_call_operand.vmem [shape: s32[13,1], index: 3, kind: input, shape index: {}]
  %s4 = inlined_call_operand.hbm [shape: f32[13,333], index: 4, kind: output, shape index: {}]
  %s5 = sld [smem:[#allocation0]]
  $region57: #{tpu_custom_call.1} parent=0
    _
  %s7 = ssub.s32 1, %s5
  %s8 = scalar_select 0, %s7, %s5
  $region1: #{tpu_custom_call.1} parent=0
    #allocation3 [shape = 'u8[32768]{0}', space=vmem, size = 0x8000, scoped, tag = 'input window, operand 1']
    #allocation4 [shape = 's32[2]{0}', space=sflag, size = 0x8, scoped, tag = 'scoped memory for tpu_custom_call.1']
    #allocation5 [shape = 's32[2]{0}', space=sflag, size = 0x8, scoped, tag = 'scoped memory for tpu_custom_call.1']
    #allocation6 [shape = 'u8[8192]{0}', space=vmem, size = 0x2000, scoped, tag = 'output window, operand 0']
    %9 = vsyncpa [#allocation4], 0
    %s10 = scalar_lea.sflag [#allocation4], 1
    %11 = vsyncpa %s10, 0
    %12 = vsyncpa [#allocation5], 0
    %s13 = scalar_lea.sflag [#allocation5], 1
    %14 = vsyncpa %s13, 0
    loop: start=0, step=1, limit=8
    $region2: #{tpu_custom_call.1} parent=1 // loop_pre_header
      _
    $region3: #{tpu_custom_call.1} parent=1 // loop_header
      %s16 = sphi 0, %s20
      %p17 = scmp.ge.s32.totalorder %s16, 8
      %s23 = sphi 0, %s35
      %s24 = sphi 0, %s31
      %s25 = sphi 0, %s23
      %s26 = sphi 0, %s24
      %s27 = sphi 0, %s25
      %s28 = sphi 0, %s26
      %s38 = sphi 0, %s40
      %s41 = sphi 0, %s38
      %s42 = sphi 0, %s41
      %s58 = sphi 0, %s42
      %s64 = sphi 0, %s66
      %s67 = sphi 0, %s64
      %s68 = sphi 0, %s67
      %s84 = sphi 0, %s68
      %s90 = sphi 0, %s92
      %s93 = sphi 0, %s90
      %s94 = sphi 0, %s93
      %s110 = sphi 0, %s94
      %s116 = sphi 0, %s118
      %s119 = sphi 0, %s116
      %s120 = sphi 0, %s119
      %s136 = sphi 0, %s120
      %s144 = sphi 0, %s146
      %s147 = sphi 0, %s144
      %s148 = sphi 0, %s147
      %s164 = sphi 0, %s148
    $region4: #{tpu_custom_call.1} parent=1 // loop_header_branch
      %19 = sbr.rel (%p17) target = $region8
    $region5: #{tpu_custom_call.1} parent=1 // loop_body
      %s21 = ssub.s32 %s16, 1
      %s22 = ssub.s32 %s16, 2
      %s29 = sadd.s32 1, %s24
      %p30 = scmp.ge.s32.totalorder %s29, 2
      %s31 = scalar_select %p30, 0, %s29
      %s32 = sadd.s32 1, %s23
      %s33 = scalar_select %p30, %s32, %s23
      %p34 = scmp.ge.s32.totalorder %s33, 3
      %s35 = scalar_select %p34, 0, %s33
      %s36 = ssub.s32 %s24, %s31
      %p37 = scmp.eq.s32.totalorder %s36, 0
      %s39 = sadd.s32 %s38, 1
      %s40 = scalar_select %p37, %s38, %s39
      %p43 = pneg %p37
      %p44 = scmp.eq.s32.totalorder %s16, 5
      %p45 = por %p43, %p44
      %p46 = scmp.ne.s32.totalorder %s38, %s41
      %p47 = scmp.eq.s32.totalorder %s16, 0
      %p48 = por %p46, %p47
      %p49 = scmp.ne.s32.totalorder %s38, %s41
      %p50 = scmp.eq.s32.totalorder %s21, 5
      %p51 = por %p49, %p50
      %p52 = scmp.ne.s32.totalorder %s41, %s42
      %p53 = scmp.eq.s32.totalorder %s21, 0
      %p54 = por %p52, %p53
      %p55 = scmp.ne.s32.totalorder %s41, %s42
      %p56 = scmp.eq.s32.totalorder %s22, 5
      %p57 = por %p55, %p56
      %p59 = scmp.ne.s32.totalorder %s42, %s58
      %p60 = scmp.eq.s32.totalorder %s22, 0
      %p61 = por %p59, %p60
      %s62 = ssub.s32 %s23, %s35
      %p63 = scmp.eq.s32.totalorder %s62, 0
      %s65 = sadd.s32 %s64, 1
      %s66 = scalar_select %p63, %s64, %s65
      %p69 = pneg %p63
      %p70 = scmp.eq.s32.totalorder %s16, 5
      %p71 = por %p69, %p70
      %p72 = scmp.ne.s32.totalorder %s64, %s67
      %p73 = scmp.eq.s32.totalorder %s16, 0
      %p74 = por %p72, %p73
      %p75 = scmp.ne.s32.totalorder %s64, %s67
      %p76 = scmp.eq.s32.totalorder %s21, 5
      %p77 = por %p75, %p76
      %p78 = scmp.ne.s32.totalorder %s67, %s68
      %p79 = scmp.eq.s32.totalorder %s21, 0
      %p80 = por %p78, %p79
      %p81 = scmp.ne.s32.totalorder %s67, %s68
      %p82 = scmp.eq.s32.totalorder %s22, 5
      %p83 = por %p81, %p82
      %p85 = scmp.ne.s32.totalorder %s68, %s84
      %p86 = scmp.eq.s32.totalorder %s22, 0
      %p87 = por %p85, %p86
      %s88 = ssub.s32 %s24, %s31
      %p89 = scmp.eq.s32.totalorder %s88, 0
      %s91 = sadd.s32 %s90, 1
      %s92 = scalar_select %p89, %s90, %s91
      %p95 = pneg %p89
      %p96 = scmp.eq.s32.totalorder %s16, 5
      %p97 = por %p95, %p96
      %p98 = scmp.ne.s32.totalorder %s90, %s93
      %p99 = scmp.eq.s32.totalorder %s16, 0
      %p100 = por %p98, %p99
      %p101 = scmp.ne.s32.totalorder %s90, %s93
      %p102 = scmp.eq.s32.totalorder %s21, 5
      %p103 = por %p101, %p102
      %p104 = scmp.ne.s32.totalorder %s93, %s94
      %p105 = scmp.eq.s32.totalorder %s21, 0
      %p106 = por %p104, %p105
      %p107 = scmp.ne.s32.totalorder %s93, %s94
      %p108 = scmp.eq.s32.totalorder %s22, 5
      %p109 = por %p107, %p108
      %p111 = scmp.ne.s32.totalorder %s94, %s110
      %p112 = scmp.eq.s32.totalorder %s22, 0
      %p113 = por %p111, %p112
      %s114 = ssub.s32 %s24, %s31
      %p115 = scmp.eq.s32.totalorder %s114, 0
      %s117 = sadd.s32 %s116, 1
      %s118 = scalar_select %p115, %s116, %s117
      %p121 = pneg %p115
      %p122 = scmp.eq.s32.totalorder %s16, 5
      %p123 = por %p121, %p122
      %p124 = scmp.ne.s32.totalorder %s116, %s119
      %p125 = scmp.eq.s32.totalorder %s16, 0
      %p126 = por %p124, %p125
      %p127 = scmp.ne.s32.totalorder %s116, %s119
      %p128 = scmp.eq.s32.totalorder %s21, 5
      %p129 = por %p127, %p128
      %p130 = scmp.ne.s32.totalorder %s119, %s120
      %p131 = scmp.eq.s32.totalorder %s21, 0
      %p132 = por %p130, %p131
      %p133 = scmp.ne.s32.totalorder %s119, %s120
      %p134 = scmp.eq.s32.totalorder %s22, 5
      %p135 = por %p133, %p134
      %p137 = scmp.ne.s32.totalorder %s120, %s136
      %p138 = scmp.eq.s32.totalorder %s22, 0
      %p139 = por %p137, %p138
      %s140 = ssub.s32 %s24, %s31
      %s141 = ssub.s32 %s23, %s35
      %s142 = sor.u32 %s140, %s141
      %p143 = scmp.eq.s32.totalorder %s142, 0
      %s145 = sadd.s32 %s144, 1
      %s146 = scalar_select %p143, %s144, %s145
      %p149 = pneg %p143
      %p150 = scmp.eq.s32.totalorder %s16, 5
      %p151 = por %p149, %p150
      %p152 = scmp.ne.s32.totalorder %s144, %s147
      %p153 = scmp.eq.s32.totalorder %s16, 0
      %p154 = por %p152, %p153
      %p155 = scmp.ne.s32.totalorder %s144, %s147
      %p156 = scmp.eq.s32.totalorder %s21, 5
      %p157 = por %p155, %p156
      %p158 = scmp.ne.s32.totalorder %s147, %s148
      %p159 = scmp.eq.s32.totalorder %s21, 0
      %p160 = por %p158, %p159
      %p161 = scmp.ne.s32.totalorder %s147, %s148
      %p162 = scmp.eq.s32.totalorder %s22, 5
      %p163 = por %p161, %p162
      %p165 = scmp.ne.s32.totalorder %s148, %s164
      %p166 = scmp.eq.s32.totalorder %s22, 0
      %p167 = por %p165, %p166
      %p168 = scmp.le.s32.totalorder 1, %s16
      %p169 = scmp.lt.s32.totalorder %s16, 7
      %p170 = pnand %p168, %p169
      %p171 = pneg %p170
      // Predicated region
      $region9: #{tpu_custom_call.1} parent=5 // pred_check
        _
      $region10: #{tpu_custom_call.1} parent=5 // pred_check_branch
        %173 = sbr.rel (%p170) target = $region12
      $region11: #{tpu_custom_call.1} parent=5 // pred_region
        %s174 = ssub.s32 %s16, 1
      $region12: #{tpu_custom_call.1} parent=5 // pred_fallthru
        _
      %p175 = scmp.lt.s32.totalorder %s16, 6
      // Predicated region
      $region13: #{tpu_custom_call.1} parent=5 // pred_check
        %p176 = pneg %p175
      $region14: #{tpu_custom_call.1} parent=5 // pred_check_branch
        %178 = sbr.rel (%p176) target = $region16
      $region15: #{tpu_custom_call.1} parent=5 // pred_region
        // Predicated region
        $region17: #{tpu_custom_call.1} parent=15 // pred_check
          %p179 = pneg %p48
        $region18: #{tpu_custom_call.1} parent=15 // pred_check_branch
          %181 = sbr.rel (%p179) target = $region20
        $region19: #{tpu_custom_call.1} parent=15 // pred_region
          %p182 = scmp.lt.s32.totalorder %s24, 1
          %s183 = scalar_select %p182, %s24, 1
          %s184 = smul.addr %s183, 8
          %s185 = scalar_lea.vmem %s0, %s184
        $region20: #{tpu_custom_call.1} parent=15 // pred_fallthru
          _
        // Predicated region
        $region21: #{tpu_custom_call.1} parent=15 // pred_check
          %p186 = pneg %p74
        $region22: #{tpu_custom_call.1} parent=15 // pred_check_branch
          %188 = sbr.rel (%p186) target = $region24
        $region23: #{tpu_custom_call.1} parent=15 // pred_region
          %s189 = sand.u32 %s64, 1
          %s190 = scalar_lea.sflag [#allocation4], %s189
          %s191 = sand.u32 %s64, 1
          %s192 = smul.addr %s191, 32
          %s193 = scalar_lea.vmem [#allocation3], %s192
          %s195 = ssub.s32 512, 512
          %196 = vsyncadd %s190, %s195
          %s197 = smul.addr %s23, 128
          %s198 = scalar_lea.hbm %s1, %s197
          %s199 = sshll.u32 %s193, 4
          %s200 = int_to_ptr.vmem [resolvable:$true] %s199
          %205 = dma.hbm_to_vmem [thread:$0]  %s198, 512, %s200, %s190, 384, 128, 8
        $region24: #{tpu_custom_call.1} parent=15 // pred_fallthru
          _
        // Predicated region
        $region25: #{tpu_custom_call.1} parent=15 // pred_check
          %p206 = pneg %p100
        $region26: #{tpu_custom_call.1} parent=15 // pred_check_branch
          %208 = sbr.rel (%p206) target = $region28
        $region27: #{tpu_custom_call.1} parent=15 // pred_region
          %p209 = scmp.lt.s32.totalorder %s24, 1
          %s210 = scalar_select %p209, %s24, 1
          %s211 = smul.addr %s210, 8
          %s212 = scalar_lea.vmem %s2, %s211
        $region28: #{tpu_custom_call.1} parent=15 // pred_fallthru
          _
        // Predicated region
        $region29: #{tpu_custom_call.1} parent=15 // pred_check
          %p213 = pneg %p126
        $region30: #{tpu_custom_call.1} parent=15 // pred_check_branch
          %215 = sbr.rel (%p213) target = $region32
        $region31: #{tpu_custom_call.1} parent=15 // pred_region
          %p216 = scmp.lt.s32.totalorder %s24, 1
          %s217 = scalar_select %p216, %s24, 1
          %s218 = smul.addr %s217, 8
          %s219 = scalar_lea.vmem %s3, %s218
        $region32: #{tpu_custom_call.1} parent=15 // pred_fallthru
          _
      $region16: #{tpu_custom_call.1} parent=5 // pred_fallthru
        _
      %p220 = scmp.le.s32.totalorder 1, %s16
      %p221 = scmp.lt.s32.totalorder %s16, 7
      %p222 = pnand %p220, %p221
      %p223 = pneg %p222
      // Predicated region
      $region33: #{tpu_custom_call.1} parent=5 // pred_check
        _
      $region34: #{tpu_custom_call.1} parent=5 // pred_check_branch
        %225 = sbr.rel (%p222) target = $region36
      $region35: #{tpu_custom_call.1} parent=5 // pred_region
        %s226 = ssub.s32 %s16, 1
        %s227 = sand.u32 %s67, 1
        %s228 = scalar_lea.sflag [#allocation4], %s227
        %s229 = sand.u32 %s67, 1
        %s230 = smul.addr %s229, 32
        %s231 = scalar_lea.vmem [#allocation3], %s230
        // Predicated region
        $region37: #{tpu_custom_call.1} parent=35 // pred_check
          %p232 = pneg %p80
        $region38: #{tpu_custom_call.1} parent=35 // pred_check_branch
          %234 = sbr.rel (%p232) target = $region40
        $region39: #{tpu_custom_call.1} parent=35 // pred_region
          %235 = dma.done %s228, 512
        $region40: #{tpu_custom_call.1} parent=35 // pred_fallthru
          _
        %p236 = scmp.lt.s32.totalorder %s26, 1
        %s237 = scalar_select %p236, %s26, 1
        %s238 = smul.addr %s237, 8
        %s239 = scalar_lea.vmem %s0, %s238
        %p240 = pneg %p54
        %p241 = pneg %p51
        %s242 = sand.u32 %s67, 1
        %s243 = scalar_lea.sflag [#allocation4], %s242
        %s244 = sand.u32 %s67, 1
        %s245 = smul.addr %s244, 32
        %s246 = scalar_lea.vmem [#allocation3], %s245
        %p247 = pneg %p80
        %p248 = pneg %p77
        %p249 = scmp.lt.s32.totalorder %s26, 1
        %s250 = scalar_select %p249, %s26, 1
        %s251 = smul.addr %s250, 8
        %s252 = scalar_lea.vmem %s2, %s251
        %p253 = pneg %p106
        %p254 = pneg %p103
        %p255 = scmp.lt.s32.totalorder %s26, 1
        %s256 = scalar_select %p255, %s26, 1
        %s257 = smul.addr %s256, 8
        %s258 = scalar_lea.vmem %s3, %s257
        %p259 = pneg %p132
        %p260 = pneg %p129
        %p261 = pneg %p160
        %p262 = pneg %p157
        %s263 = sand.u32 %s147, 1
        %s264 = scalar_lea.sflag [#allocation5], %s263
        %s265 = sand.u32 %s147, 1
        %s266 = smul.addr %s265, 8
        %s267 = scalar_lea.vmem [#allocation6], %s266
        %p268 = scmp.lt.s32.totalorder %s26, 1
        %s269 = scalar_select %p268, %s26, 1
        %s270 = smul.addr %s269, 8
        %s271 = scalar_lea.vmem %s0, %s270
        %p272 = scmp.lt.s32.totalorder %s26, 1
        %s273 = scalar_select %p272, %s26, 1
        %s274 = smul.addr %s273, 8
        %s275 = scalar_lea.vmem %s2, %s274
        %p276 = scmp.lt.s32.totalorder %s26, 1
        %s277 = scalar_select %p276, %s26, 1
        %s278 = smul.addr %s277, 8
        %s279 = scalar_lea.vmem %s3, %s278
        %p280 = scmp.eq.s32.totalorder %s26, 0
        // Predicated region
        $region41: #{tpu_custom_call.1} parent=35 // pred_check
          %p281 = pneg %p280
        $region42: #{tpu_custom_call.1} parent=35 // pred_check_branch
          %283 = sbr.rel (%p281) target = $region44
        $region43: #{tpu_custom_call.1} parent=35 // pred_region
          %v284 = vld [vmem:[%s231] sm:$0xff]
          %v285 = vld [vmem:[%s231 + $0x8] sm:$0xff]
          %v286 = vld [vmem:[%s231 + $0x10] sm:$0xff]
          %v287 = vld [vmem:[%s231 + $0x18] sm:$0xff]
          %v288 = vmul.f32 %v284, %v284
          %v289 = vmul.f32 %v285, %v285
          %v290 = vmul.f32 %v286, %v286
          %v291 = vmul.f32 %v287, %v287
          %v292 = vadd.f32 %v288, %v289
          %v293 = vadd.f32 %v292, %v290
          %v294 = vadd.f32 %v293, %v291
          %v295 = vrot.slane %v294, 4
          %v296 = vadd.f32 %v294, %v295
          %v297 = vrot.slane %v296, 2
          %v298 = vadd.f32 %v296, %v297
          %v299 = vrot.slane %v298, 1
          %v300 = vadd.f32 %v298, %v299
          %v301 = vmax.f32 %v300, 1e-24
          %v302 = vrsqrt.pop %v301
          %303 = vst [vmem:[#allocation2] sm:$0x1] %v302
        $region44: #{tpu_custom_call.1} parent=35 // pred_fallthru
          _
        %v304 = vld [vmem:[%s271] sm:$0xff]
        %v305 = vld [vmem:[%s231] sm:$0xff]
        %v306 = vld [vmem:[%s231 + $0x8] sm:$0xff]
        %v307 = vld [vmem:[%s231 + $0x10] sm:$0xff]
        %v308 = vld [vmem:[%s231 + $0x18] sm:$0xff]
        %vm309 = vcmask 261120
        %v311 = vsel %vm309, %v304, 0
        %313 = vmatprep.subr.mxu0 0.0
        %314 = vmatpush1.msra.mxu0 %v305
        %315 = vmatprep.subr.mxu0 0.0
        %316 = vmatpush1.msra.mxu0 %v306
        %317 = vmatprep.subr.mxu0 0.0
        %318 = vmatpush1.msra.mxu0 %v307
        %319 = vmatprep.subr.mxu0 0.0
        %320 = vmatpush1.msra.mxu0 %v308
        %321 = vmatprep.subr.mxu0 0.0
        %322 = vmatpush1.msra.mxu0 0.0
        %323 = vmatprep.subr.mxu0 0.0
        %324 = vmatpush1.msra.mxu0 0.0
        %325 = vmatprep.subr.mxu0 0.0
        %326 = vmatpush1.msra.mxu0 0.0
        %327 = vmatprep.subr.mxu0 0.0
        %328 = vmatpush1.msra.mxu0 0.0
        %329 = vmatprep.subr.mxu0 0.0
        %330 = vmatpush1.msra.mxu0 0.0
        %331 = vmatprep.subr.mxu0 0.0
        %332 = vmatpush1.msra.mxu0 0.0
        %333 = vmatprep.subr.mxu0 0.0
        %334 = vmatpush1.msra.mxu0 0.0
        %335 = vmatprep.subr.mxu0 0.0
        %336 = vmatpush1.msra.mxu0 0.0
        %337 = vmatprep.subr.mxu0 0.0
        %338 = vmatpush1.msra.mxu0 0.0
        %339 = vmatprep.subr.mxu0 0.0
        %340 = vmatpush1.msra.mxu0 0.0
        %341 = vmatprep.subr.mxu0 0.0
        %342 = vmatpush1.msra.mxu0 0.0
        %343 = vmatprep.subr.mxu0 0.0
        %344 = vmatpush1.msra.mxu0 0.0
        %345 = vmatprep.subr.mxu0 0.0
        %346 = vmatpush1.msra.mxu0 0.0
        %347 = vmatprep.subr.mxu0 0.0
        %348 = vmatpush1.msra.mxu0 0.0
        %349 = vmatprep.subr.mxu0 0.0
        %350 = vmatpush1.msra.mxu0 0.0
        %351 = vmatprep.subr.mxu0 0.0
        %352 = vmatpush1.msra.mxu0 0.0
        %353 = vmatprep.subr.mxu0 0.0
        %354 = vmatpush1.msra.mxu0 0.0
        %355 = vmatprep.subr.mxu0 0.0
        %356 = vmatpush1.msra.mxu0 0.0
        %357 = vmatprep.subr.mxu0 0.0
        %358 = vmatpush1.msra.mxu0 0.0
        %359 = vmatprep.subr.mxu0 0.0
        %360 = vmatpush1.msra.mxu0 0.0
        %361 = vmatprep.subr.mxu0 0.0
        %362 = vmatpush1.msra.mxu0 0.0
        %363 = vmatprep.subr.mxu0 0.0
        %364 = vmatpush1.msra.mxu0 0.0
        %365 = vmatprep.subr.mxu0 0.0
        %366 = vmatpush1.msra.mxu0 0.0
        %367 = vmatprep.subr.mxu0 0.0
        %368 = vmatpush1.msra.mxu0 0.0
        %369 = vmatprep.subr.mxu0 0.0
        %370 = vmatpush1.msra.mxu0 0.0
        %371 = vmatprep.subr.mxu0 0.0
        %372 = vmatpush1.msra.mxu0 0.0
        %373 = vmatprep.subr.mxu0 0.0
        %374 = vmatpush1.msra.mxu0 0.0
        %375 = vmatprep.subr.mxu0 0.0
        %376 = vmatpush1.msra.mxu0 0.0
        %377 = vmatprep.mubr.f32.mxu0 0.0
        %378 = vmatmul.mubr.f32.gmra.mrb[0].mxu0 %v311
        %v379 = vpop.f32.mrb[0].mxu0
        %v380 = vadd.f32 0.0, %v379
        %v381 = vpop.f32.mrb[0].mxu0
        %382 = vdwg.mxu0
        %v383 = vld [vmem:[%s275] sm:$0xff]
        %385 = vset.pattern.permute.xlu0 0
        %386 = vperm.xlu0 %385, %v383
        %v387 = vpop.permute.xlu0 %386
        %v389 = vmul.f32 %v380, %v387
        %v390 = vld [vmem:[#allocation2] sm:$0x1]
        %v392 = vlaneseq
        %v393 = vshrl.u32 %v392, 7
        %v394 = vsub.s32 0, %v393
        %v395 = vrot.slane %v390, %v394
        %v397 = vmul.f32 %v389, %v395
        %v398 = vld [vmem:[%s279] sm:$0xff]
        %s399 = smul.u32 %s25, 128
        %v400 = vstv %s399
        %v401 = vsub.s32 %v398, %v400
        %v402 = vlaneseq
        %v403 = vand.u32 %v402, 127
        %404 = vset.pattern.permute.xlu0 0
        %405 = vperm.xlu0 %404, %v401
        %v406 = vpop.permute.xlu0 %405
        %vm407 = vcmp.eq.s32.totalorder %v403, %v406
        %v408 = vsel %vm407, %v397, 0.0
        %409 = vadd.xlane.f32.xlu0 %v408
        %v410 = vpop.xlane.xlu0 %409
        %v411 = vmul.f32 %v410, %v410
        %v412 = vsub.f32 1.0, %v411
        %v413 = vmax.f32 %v412, 0.0
        %v414 = vrsqrt.pop %v413
        %v415 = vmul.f32 %v413, %v414
        %vm416 = vcmp.eq.f32.partialorder %v413, inf
        %v417 = vsel %vm416, %v413, %v415
        %vm418 = vcmp.eq.f32.partialorder %v413, 0.0
        %v419 = vand.u32 %v413, 2147483648
        %v420 = vsel %vm418, %v419, %v417
        %v421 = vmul.f32 %v410, 0.87758255
        %v422 = vmul.f32 %v420, 0.47942555
        %v423 = vsub.f32 %v421, %v422
        %vm424 = vcmp.gt.f32.partialorder %v410, -0.87758255
        %v425 = vsub.f32 %v410, 0.23971277
        %v426 = vsel %vm424, %v423, %v425
        %v427 = vsel %vm407, %v426, %v397
        %v428 = vmul.f32 %v427, 64.0
        %429 = vst [vmem:[%s267] sm:$0xff] %v428
        %s430 = sand.u32 %s147, 1
        %s431 = scalar_lea.sflag [#allocation5], %s430
        %s432 = sand.u32 %s147, 1
        %s433 = smul.addr %s432, 8
        %s434 = scalar_lea.vmem [#allocation6], %s433
        // Predicated region
        $region45: #{tpu_custom_call.1} parent=35 // pred_check
          %p435 = pneg %p157
        $region46: #{tpu_custom_call.1} parent=35 // pred_check_branch
          %437 = sbr.rel (%p435) target = $region48
        $region47: #{tpu_custom_call.1} parent=35 // pred_region
          %s439 = ssub.s32 128, 128
          %440 = vsyncadd %s431, %s439
          %s441 = smul.addr %s26, 3
          %s442 = sadd.s32 %s25, %s441
          %s443 = smul.addr %s442, 128
          %s444 = scalar_lea.hbm %s4, %s443
          %s446 = sshll.u32 %s434, 4
          %s447 = int_to_ptr.vmem [resolvable:$true] %s446
          %449 = dma.vmem_to_hbm [thread:$0]  %s447, 128, %s444, %s431
        $region48: #{tpu_custom_call.1} parent=35 // pred_fallthru
          _
      $region36: #{tpu_custom_call.1} parent=5 // pred_fallthru
        _
      %p450 = scmp.le.s32.totalorder 2, %s16
      // Predicated region
      $region49: #{tpu_custom_call.1} parent=5 // pred_check
        %p451 = pneg %p450
      $region50: #{tpu_custom_call.1} parent=5 // pred_check_branch
        %453 = sbr.rel (%p451) target = $region52
      $region51: #{tpu_custom_call.1} parent=5 // pred_region
        %s454 = ssub.s32 %s16, 2
        // Predicated region
        $region53: #{tpu_custom_call.1} parent=51 // pred_check
          %p455 = pneg %p163
        $region54: #{tpu_custom_call.1} parent=51 // pred_check_branch
          %457 = sbr.rel (%p455) target = $region56
        $region55: #{tpu_custom_call.1} parent=51 // pred_region
          %s458 = sand.u32 %s148, 1
          %s459 = scalar_lea.sflag [#allocation5], %s458
          %s460 = sand.u32 %s148, 1
          %s461 = smul.addr %s460, 8
          %s462 = scalar_lea.vmem [#allocation6], %s461
          %463 = dma.done %s459, 128
        $region56: #{tpu_custom_call.1} parent=51 // pred_fallthru
          _
      $region52: #{tpu_custom_call.1} parent=5 // pred_fallthru
        _
    $region6: #{tpu_custom_call.1} parent=1 // loop_footer
      %s20 = sadd.s32 1, %s16
    $region7: #{tpu_custom_call.1} parent=1 // loop_footer_branch
      %15 = sbr.rel target = $region3
    $region8: #{tpu_custom_call.1} parent=1 // loop_exit
      _
    %464 = vsyncpa [#allocation4], 1
    %s465 = scalar_lea.sflag [#allocation4], 1
    %466 = vsyncpa %s465, 1
    %467 = vsyncpa [#allocation5], 1
    %s468 = scalar_lea.sflag [#allocation5], 1
    %469 = vsyncpa %s468, 1

</llo_original>
